<compile_context>
chip_gen: v7x
topology: tpu7x:2x2x1
jax: 0.10.0
libtpu: 0.0.40
codegen_flags: <defaults>
</compile_context>

<pallas_src>
import jax
import jax.numpy as jnp
import numpy as np
from jax import lax
from jax.experimental import pallas as pl
from jax.experimental.pallas import tpu as pltpu

_EPS = 1e-8


def _cdiv(a, b):
    return -(-a // b)


def _vmem_capacity_bytes():
    try:
        info = pltpu.get_tpu_info()
        v = int(getattr(info, "vmem_capacity_bytes", 0))
        if v > 0:
            return v
    except Exception:
        pass
    return 64 * 1024 * 1024  # conservative: v7x per-TC VMEM


def _fold_rows(a, rows_out):
    """Sum row-groups of an (R, D) array down to (rows_out, D) with VPU adds."""
    r, d = a.shape
    if r == rows_out:
        return a
    return jnp.sum(jnp.reshape(a, (r // rows_out, rows_out, d)), axis=0)


# ------------------------------------------------------------------ kernels

def _make_mse_kernel(c_true, cb, g_per_split, acc_rows, need_mask):
    def kernel(x_ref, p_ref, o_ref, acc_ref):
        g = pl.program_id(1)

        @pl.when(g == 0)
        def _():
            acc_ref[...] = jnp.zeros_like(acc_ref)

        x = x_ref[...].astype(jnp.float32)          # (cb, N, D)
        p = p_ref[...].astype(jnp.float32)          # (cb, D)
        d = p_ref.shape[-1]

        if need_mask:                                # ragged last class block
            blk = pl.program_id(0) * g_per_split + g
            cid = lax.broadcasted_iota(jnp.int32, (cb, d), 0) + blk * cb
            valid = cid < c_true                     # (cb, D)
            p = jnp.where(valid, p, 0.0)
            x = jnp.where(valid[:, None, :], x, 0.0)

        diff = x - p[:, None, :]                     # proto.expand_as via broadcast
        # Reduce over the class axis only (adds across vregs, no cross-lane work),
        # then fold the sample axis in groups of 8 sublanes -> (acc_rows, D) acc.
        part = jnp.sum(diff * diff, axis=0)          # (N, D)
        acc_ref[...] += _fold_rows(part, acc_rows)

        @pl.when(g == pl.num_programs(1) - 1)
        def _():
            # single cross-lane reduction + lane-dense store per split
            o_ref[...] = jnp.broadcast_to(jnp.sum(acc_ref[...]), o_ref.shape)

    return kernel


def _make_cos_kernel(c_true, cb, g_per_split, acc_rows, n_rows, need_mask):
    def kernel(x_ref, p_ref, o_ref, acc_ref):
        g = pl.program_id(1)

        @pl.when(g == 0)
        def _():
            acc_ref[...] = jnp.zeros_like(acc_ref)

        x = x_ref[...].astype(jnp.float32)          # (cb, N, D)
        p = p_ref[...].astype(jnp.float32)          # (cb, D)
        d = p_ref.shape[-1]

        if need_mask:
            blk = pl.program_id(0) * g_per_split + g
            cid = lax.broadcasted_iota(jnp.int32, (cb, d), 0) + blk * cb
            valid = cid < c_true
            p = jnp.where(valid, p, 0.0)
            x = jnp.where(valid[:, None, :], x, 0.0)

        # Broadcast proto has constant columns:
        #   dot_d = p_d * sum_n x[n,d];   (||x||*||y||)_d^2 = colsum(x^2) * N * p_d^2
        sx = jnp.sum(x, axis=1)                      # (cb, D)
        sxx = jnp.sum(x * x, axis=1)                 # (cb, D)
        dot = p * sx
        denom2 = sxx * (float(n_rows) * p * p)
        scores = dot * lax.rsqrt(jnp.maximum(denom2, _EPS * _EPS))  # EUP, no divide
        acc_ref[...] += _fold_rows(scores, acc_rows)

        @pl.when(g == pl.num_programs(1) - 1)
        def _():
            o_ref[...] = jnp.broadcast_to(jnp.sum(acc_ref[...]), o_ref.shape)

    return kernel


# ------------------------------------------------------------- pallas wrapper

def _per_class_partial_sum(x, p, distance, *, max_block_classes=None, core_splits=1):
    """x: (C, N, D) features, p: (C, D) protos.

    Returns (f32 scalar):
      mse: sum over classes/elements of (x - p)^2
      cos: sum over classes/columns of cosine-similarity scores
    """
    C, N, D = x.shape
    itemsize = jnp.dtype(x.dtype).itemsize

    # --- per-generation VMEM budgeting -------------------------------------
    vmem_bytes = _vmem_capacity_bytes()
    vmem_limit = int(min((vmem_bytes * 3) // 4, 100 * 1024 * 1024))
    # feature block is double-buffered by the pipeline: keep 2*block << limit
    target_block_bytes = max(1 << 20, min(16 * 1024 * 1024, vmem_limit // 4))

    cb = max(1, min(C, target_block_bytes // max(1, N * D * itemsize)))
    if max_block_classes is not None:
        cb = max(1, min(cb, int(max_block_classes)))
    if cb < C:
        # proto block (cb, D): second-to-last dim must be a sublane multiple (8)
        # unless it equals the full class dim. (Very large per-class tensors
        # would additionally need an N/D tiling axis -- not needed here.)
        cb = min(C, max(8, (cb // 8) * 8))

    nblocks = _cdiv(C, cb)
    nsplits = max(1, min(int(core_splits), nblocks))   # >1 only useful on v7x (2 TCs)
    g_per_split = _cdiv(nblocks, nsplits)
    need_mask = (nsplits * g_per_split * cb) != C      # ragged last block -> in-kernel mask

    if nsplits * g_per_split > nblocks:
        def blk_of(s, g):                              # clamp fully-OOB split blocks
            return jnp.minimum(s * g_per_split + g, nblocks - 1)
    else:
        def blk_of(s, g):
            return s * g_per_split + g

    if distance == "mse":
        acc_rows = 8 if (N > 8 and N % 8 == 0) else N
        kernel = _make_mse_kernel(C, cb, g_per_split, acc_rows, need_mask)
    else:
        acc_rows = 8 if (cb > 8 and cb % 8 == 0) else cb
        kernel = _make_cos_kernel(C, cb, g_per_split, acc_rows, N, need_mask)

    cost = pl.CostEstimate(
        flops=int((4 if distance == "mse" else 5) * C * N * D),
        transcendentals=0 if distance == "mse" else int(C * D),
        bytes_accessed=int(C * N * D * itemsize
                           + C * D * jnp.dtype(p.dtype).itemsize
                           + nsplits * 8 * 128 * 4),
    )

    if nsplits > 1:
        # v7x: shard the streaming read of class blocks across the 2 TensorCores.
        sem0 = getattr(pltpu, "CORE_PARALLEL", "parallel")
    else:
        sem0 = "arbitrary"

    partials = pl.pallas_call(
        kernel,
        out_shape=jax.ShapeDtypeStruct((nsplits, 8, 128), jnp.float32),
        grid=(nsplits, g_per_split),
        in_specs=[
            pl.BlockSpec((cb, N, D), lambda s, g: (blk_of(s, g), 0, 0)),
            pl.BlockSpec((cb, D), lambda s, g: (blk_of(s, g), 0)),
        ],
        out_specs=pl.BlockSpec((1, 8, 128), lambda s, g: (s, 0, 0)),
        scratch_shapes=[pltpu.VMEM((acc_rows, D), jnp.float32)],
        compiler_params=pltpu.CompilerParams(
            dimension_semantics=(sem0, "arbitrary"),
            vmem_limit_bytes=vmem_limit),
        cost_estimate=cost,
    )(x, p)

    # one scalar per split (lane-dense output block) -> sum splits
    return jnp.sum(partials[:, 0, 0])


def proto_clustering_loss_stacked(x, p, distance="mse", *, num_active=None,
                                  max_block_classes=None, core_splits=1):
    """Pre-stacked entry point: x (C, N, D) features, p (C, D) protos."""
    C, N, D = x.shape
    if num_active is None:
        num_active = C
    partial = _per_class_partial_sum(x, p, distance,
                                     max_block_classes=max_block_classes,
                                     core_splits=core_splits)
    if distance == "mse":
        total = partial / float(N * D)            # sum of per-class MSE means
    else:
        total = float(C) - partial / float(D)     # sum of per-class mean(1 - cos)
    return (total / float(num_active)).astype(jnp.float32)


def proto_clustering_loss(feature_vecs, protos, distance="mse", *,
                          max_block_classes=None, core_splits=1):
    """JAX/Pallas equivalent of ProtoClustering(manifold=None, distance=...).forward.

    Always returns a 0-d float32 scalar (consistent across early-exit paths).
    """
    active = [c for c in feature_vecs.keys() if feature_vecs[c].size > 0]
    if not active:
        return jnp.zeros((), dtype=jnp.float32)
    contributing = [c for c in active if protos[c].size > 0]
    if not contributing:
        return jnp.zeros((), dtype=jnp.float32)

    shapes = {tuple(feature_vecs[c].shape) for c in contributing}
    assert len(shapes) == 1, "all contributing classes must share the same (N, D)"

    x = jnp.stack([feature_vecs[c] for c in contributing], axis=0)            # (C, N, D)
    p = jnp.stack([jnp.reshape(protos[c], (-1,)) for c in contributing], 0)   # (C, D)
    return proto_clustering_loss_stacked(
        x, p, distance, num_active=len(active),
        max_block_classes=max_block_classes, core_splits=core_splits)


# -------------------------------------------------------------- pure-JAX ref

def _reference_loss(feature_vecs, protos, distance="mse"):
    """Pure-JAX reference matching the PyTorch module semantics."""
    active = [c for c in feature_vecs.keys() if feature_vecs[c].size > 0]
    if not active:
        return jnp.zeros((), dtype=jnp.float32)
    l = 0.0
    for c in active:
        if protos[c].size == 0:
            continue
        xf = feature_vecs[c].astype(jnp.float32)
        yf = jnp.broadcast_to(jnp.reshape(protos[c], (1, -1)), xf.shape).astype(jnp.float32)
        if distance == "mse":
            l = l + jnp.mean((xf - yf) ** 2)
        else:
            dot = jnp.sum(xf * yf, axis=0)
            denom = jnp.maximum(jnp.linalg.norm(xf, axis=0) * jnp.linalg.norm(yf, axis=0), _EPS)
            l = l + jnp.mean(1.0 - dot / denom)
    return jnp.asarray(l / len(active), dtype=jnp.float32)


# --------------------------------------------------------------------- test

if __name__ == "__main__":
    key = jax.random.PRNGKey(0)

    # ---- test 1: small shapes, single class block, one empty (inactive) class
    N, D = 8, 128
    n_classes = 4
    feature_vecs, protos = {}, {}
    for c in range(n_classes):
        key, k1, k2 = jax.random.split(key, 3)
        if c == n_classes - 1:
            feature_vecs[c] = jnp.zeros((0, D), dtype=jnp.float32)   # excluded from active
        else:
            feature_vecs[c] = jax.random.normal(k1, (N, D), dtype=jnp.float32)
        protos[c] = jax.random.normal(k2, (D,), dtype=jnp.float32)

    for dist in ("mse", "cos"):
        out = jax.block_until_ready(proto_clustering_loss(feature_vecs, protos, dist))
        ref = jax.block_until_ready(_reference_loss(feature_vecs, protos, dist))
        np.testing.assert_allclose(np.asarray(out), np.asarray(ref), rtol=1e-4, atol=1e-5)

    # ---- test 2: more classes + forced small class block -> multi-block grid
    #      with a ragged, in-kernel-masked last block (no HBM padding copy).
    N2, D2 = 16, 256
    n_classes2 = 12
    fv2, pr2 = {}, {}
    for c in range(n_classes2):
        key, k1, k2 = jax.random.split(key, 3)
        if c == 5:
            fv2[c] = jnp.zeros((0, D2), dtype=jnp.float32)
        else:
            fv2[c] = jax.random.normal(k1, (N2, D2), dtype=jnp.float32)
        pr2[c] = jax.random.normal(k2, (D2,), dtype=jnp.float32)

    for dist in ("mse", "cos"):
        out = jax.block_until_ready(
            proto_clustering_loss(fv2, pr2, dist, max_block_classes=8))
        ref = jax.block_until_ready(_reference_loss(fv2, pr2, dist))
        np.testing.assert_allclose(np.asarray(out), np.asarray(ref), rtol=1e-4, atol=1e-5)

    # ---- test 3: bf16 inputs stay bf16 in HBM (halves the streamed bytes)
    fv3 = {c: v.astype(jnp.bfloat16) for c, v in fv2.items()}
    pr3 = {c: v.astype(jnp.bfloat16) for c, v in pr2.items()}
    for dist in ("mse", "cos"):
        out = jax.block_until_ready(
            proto_clustering_loss(fv3, pr3, dist, max_block_classes=8))
        ref = jax.block_until_ready(_reference_loss(fv3, pr3, dist))
        np.testing.assert_allclose(np.asarray(out), np.asarray(ref), rtol=1e-4, atol=1e-4)

    print("KERNEL_OK")
</pallas_src>

<mosaic_0001>
module attributes {stable_mosaic.version = 11 : i64} {
  func.func @kernel(%arg0: i32, %arg1: i32, %arg2: memref<3x8x128xf32, #tpu.memory_space<vmem>>, %arg3: memref<3x128xf32, #tpu.memory_space<vmem>>, %arg4: memref<1x8x128xf32, #tpu.memory_space<vmem>>, %arg5: memref<8x128xf32, #tpu.memory_space<vmem>>) attributes {dimension_semantics = [#tpu.dimension_semantics<arbitrary>, #tpu.dimension_semantics<arbitrary>], iteration_bounds = array<i64: 1, 1>, scalar_prefetch = 0 : i64, scratch_operands = 1 : i64, tpu.core_type = #tpu.core_type<tc>, window_params = [{transform_indices = @transform_0, window_bounds = array<i64: 3, 8, 128>}, {transform_indices = @transform_1, window_bounds = array<i64: 3, 128>}, {transform_indices = @transform_2, window_bounds = array<i64: 1, 8, 128>}]} {
    %c0_i32 = arith.constant 0 : i32
    %0 = arith.cmpi eq, %arg1, %c0_i32 : i32
    %1 = arith.extui %0 : i1 to i32
    %c0_i32_0 = arith.constant 0 : i32
    %2 = arith.cmpi ne, %1, %c0_i32_0 : i32
    scf.if %2 {
      %cst_11 = arith.constant 0.000000e+00 : f32
      %16 = vector.broadcast %cst_11 : f32 to vector<8x128xf32>
      %c0_12 = arith.constant 0 : index
      %c0_13 = arith.constant 0 : index
      %17 = vector.load %arg5[%c0_12, %c0_13] : memref<8x128xf32, #tpu.memory_space<vmem>>, vector<8x128xf32>
      tpu.vector_store %arg5[%c0_12, %c0_13], %16 {strides = array<i32>} : memref<8x128xf32, #tpu.memory_space<vmem>>, vector<8x128xf32>,
    } else {
    }
    %c0 = arith.constant 0 : index
    %c0_1 = arith.constant 0 : index
    %c0_2 = arith.constant 0 : index
    %3 = vector.load %arg2[%c0, %c0_1, %c0_2] : memref<3x8x128xf32, #tpu.memory_space<vmem>>, vector<3x8x128xf32>
    %c0_3 = arith.constant 0 : index
    %c0_4 = arith.constant 0 : index
    %4 = vector.load %arg3[%c0_3, %c0_4] : memref<3x128xf32, #tpu.memory_space<vmem>>, vector<3x128xf32>
    %5 = vector.shape_cast %4 : vector<3x128xf32> to vector<3x1x128xf32>
    %6 = vector.broadcast %5 : vector<3x1x128xf32> to vector<3x8x128xf32>
    %7 = arith.subf %3, %6 : vector<3x8x128xf32>
    %8 = arith.mulf %7, %7 : vector<3x8x128xf32>
    %cst = arith.constant dense<0.000000e+00> : vector<8x128xf32>
    %9 = vector.multi_reduction <add>, %8, %cst [0] : vector<3x8x128xf32> to vector<8x128xf32>
    %c0_5 = arith.constant 0 : index
    %c0_6 = arith.constant 0 : index
    %10 = vector.load %arg5[%c0_5, %c0_6] : memref<8x128xf32, #tpu.memory_space<vmem>>, vector<8x128xf32>
    %11 = arith.addf %10, %9 : vector<8x128xf32>
    %c0_7 = arith.constant 0 : index
    %c0_8 = arith.constant 0 : index
    %12 = vector.load %arg5[%c0_7, %c0_8] : memref<8x128xf32, #tpu.memory_space<vmem>>, vector<8x128xf32>
    tpu.vector_store %arg5[%c0_7, %c0_8], %11 {strides = array<i32>} : memref<8x128xf32, #tpu.memory_space<vmem>>, vector<8x128xf32>,
    %c0_i32_9 = arith.constant 0 : i32
    %13 = arith.cmpi eq, %arg1, %c0_i32_9 : i32
    %14 = arith.extui %13 : i1 to i32
    %c0_i32_10 = arith.constant 0 : i32
    %15 = arith.cmpi ne, %14, %c0_i32_10 : i32
    scf.if %15 {
      %c0_11 = arith.constant 0 : index
      %c0_12 = arith.constant 0 : index
      %16 = vector.load %arg5[%c0_11, %c0_12] : memref<8x128xf32, #tpu.memory_space<vmem>>, vector<8x128xf32>
      %17 = vector.shape_cast %16 : vector<8x128xf32> to vector<1x8x128xf32>
      %cst_13 = arith.constant dense<0.000000e+00> : vector<1xf32>
      %18 = vector.multi_reduction <add>, %17, %cst_13 [1, 2] : vector<1x8x128xf32> to vector<1xf32>
      %19 = vector.shape_cast %18 : vector<1xf32> to vector<1x1x1xf32>
      %20 = vector.extract %19[0, 0, 0] : f32 from vector<1x1x1xf32>
      %21 = vector.broadcast %20 : f32 to vector<1x8x128xf32>
      %c0_14 = arith.constant 0 : index
      %c0_15 = arith.constant 0 : index
      %c0_16 = arith.constant 0 : index
      %22 = vector.load %arg4[%c0_14, %c0_15, %c0_16] : memref<1x8x128xf32, #tpu.memory_space<vmem>>, vector<1x8x128xf32>
      tpu.vector_store %arg4[%c0_14, %c0_15, %c0_16], %21 {strides = array<i32>} : memref<1x8x128xf32, #tpu.memory_space<vmem>>, vector<1x8x128xf32>,
    } else {
    }
    return
  }
  func.func @transform_0(%arg0: i32, %arg1: i32) -> (i32, i32, i32) {
    %c1_i32 = arith.constant 1 : i32
    %0 = arith.muli %arg0, %c1_i32 : i32
    %1 = arith.addi %0, %arg1 : i32
    %c0_i32 = arith.constant 0 : i32
    %c0_i32_0 = arith.constant 0 : i32
    %c0_i32_1 = arith.constant 0 : i32
    return %1, %c0_i32, %c0_i32_0 : i32, i32, i32
  }
  func.func @transform_1(%arg0: i32, %arg1: i32) -> (i32, i32) {
    %c1_i32 = arith.constant 1 : i32
    %0 = arith.muli %arg0, %c1_i32 : i32
    %1 = arith.addi %0, %arg1 : i32
    %c0_i32 = arith.constant 0 : i32
    %c0_i32_0 = arith.constant 0 : i32
    return %1, %c0_i32 : i32, i32
  }
  func.func @transform_2(%arg0: i32, %arg1: i32) -> (i32, i32, i32) {
    %c0_i32 = arith.constant 0 : i32
    %c0_i32_0 = arith.constant 0 : i32
    %c0_i32_1 = arith.constant 0 : i32
    return %arg0, %c0_i32, %c0_i32_0 : i32, i32, i32
  }
}

</mosaic_0001>

<llo_original>
// kernel: tpu_custom_call.1
$region0: #{tpu_custom_call.1}
  #allocation0 [shape = 'u32[]', space=smem, size = 0x4, offset = 0x4, fixed_abs, tag = 'smem constant byte address 0x4 - core index']
  #allocation1 [shape = 'u32[144,128]{1,0:T(1,128)}', space=vmem, size = 0x12000, scoped, tag = 'internal scratch']
  #allocation2 [shape = 'f32[8,128]{1,0:T(8,128)}', space=vmem, size = 0x1000, scoped, tag = 'scratch operand']
  %s0 = inlined_call_operand.hbm [shape: f32[3,8,128], index: 0, kind: input, shape index: {}]
  %s1 = inlined_call_operand.hbm [shape: f32[3,128], index: 1, kind: input, shape index: {}]
  %s2 = inlined_call_operand.hbm [shape: f32[1,8,128], index: 2, kind: output, shape index: {}]
  %s3 = sld [smem:[#allocation0]]
  $region34: #{tpu_custom_call.1} parent=0
    _
  %s5 = ssub.s32 1, %s3
  %s6 = scalar_select 0, %s5, %s3
  $region1: #{tpu_custom_call.1} parent=0
    #allocation3 [shape = 'u8[12288]{0}', space=vmem, size = 0x3000, scoped, tag = 'input window, operand 0, single buffered']
    #allocation4 [shape = 's32[1]{0}', space=sflag, size = 0x4, scoped, tag = 'scoped memory for tpu_custom_call.1']
    #allocation5 [shape = 's32[1]{0}', space=sflag, size = 0x4, scoped, tag = 'scoped memory for tpu_custom_call.1']
    #allocation6 [shape = 'u8[2048]{0}', space=vmem, size = 0x800, scoped, tag = 'input window, operand 1, single buffered']
    #allocation7 [shape = 's32[1]{0}', space=sflag, size = 0x4, scoped, tag = 'scoped memory for tpu_custom_call.1']
    #allocation8 [shape = 'u8[4096]{0}', space=vmem, size = 0x1000, scoped, tag = 'output window, operand 0, single buffered']
    %7 = vsyncpa [#allocation4], 0
    %8 = vsyncpa [#allocation7], 0
    %9 = vsyncpa [#allocation5], 0
    // Predicated region
    $region2: #{tpu_custom_call.1} parent=1 // pred_check
      _
    $region3: #{tpu_custom_call.1} parent=1 // pred_check_branch
      %11 = sbr.rel (0) target = $region5
    $region4: #{tpu_custom_call.1} parent=1 // pred_region
      %s12 = sadd.s32 0, 0
      %s13 = smul.u32 3, %s12
      %s15 = ssub.s32 384, 384
      %16 = vsyncadd [#allocation4], %s15
      %s17 = smul.addr %s13, 128
      %s18 = scalar_lea.hbm %s0, %s17
      %s19 = sshll.u32 [#allocation3], 4
      %s20 = int_to_ptr.vmem [resolvable:$true] %s19
      %25 = dma.hbm_to_vmem [thread:$0]  %s18, 384, %s20, [#allocation4], 128, 128, 8
    $region5: #{tpu_custom_call.1} parent=1 // pred_fallthru
      _
    // Predicated region
    $region6: #{tpu_custom_call.1} parent=1 // pred_check
      _
    $region7: #{tpu_custom_call.1} parent=1 // pred_check_branch
      %27 = sbr.rel (0) target = $region9
    $region8: #{tpu_custom_call.1} parent=1 // pred_region
      %s28 = sadd.s32 0, 0
      %s30 = ssub.s32 64, 64
      %31 = vsyncadd [#allocation7], %s30
      %s32 = smul.addr %s28, 64
      %s33 = scalar_lea.hbm %s1, %s32
      %s35 = sshll.u32 [#allocation6], 4
      %s36 = int_to_ptr.vmem [resolvable:$true] %s35
      %38 = dma.hbm_to_vmem [thread:$0]  %s33, 64, %s36, [#allocation7]
    $region9: #{tpu_custom_call.1} parent=1 // pred_fallthru
      _
    // Predicated region
    $region10: #{tpu_custom_call.1} parent=1 // pred_check
      _
    $region11: #{tpu_custom_call.1} parent=1 // pred_check_branch
      %40 = sbr.rel (0) target = $region13
    $region12: #{tpu_custom_call.1} parent=1 // pred_region
      %41 = dma.done [#allocation4], 384
    $region13: #{tpu_custom_call.1} parent=1 // pred_fallthru
      _
    // Predicated region
    $region14: #{tpu_custom_call.1} parent=1 // pred_check
      _
    $region15: #{tpu_custom_call.1} parent=1 // pred_check_branch
      %43 = sbr.rel (0) target = $region17
    $region16: #{tpu_custom_call.1} parent=1 // pred_region
      %44 = dma.done [#allocation7], 64
    $region17: #{tpu_custom_call.1} parent=1 // pred_fallthru
      _
    %s45 = sadd.s32 0, 0
    %s46 = smul.u32 3, %s45
    %s47 = sadd.s32 0, 0
    %p48 = scmp.eq.s32.totalorder 0, 0
    // Predicated region
    $region18: #{tpu_custom_call.1} parent=1 // pred_check
      %p49 = pneg %p48
    $region19: #{tpu_custom_call.1} parent=1 // pred_check_branch
      %51 = sbr.rel (%p49) target = $region21
    $region20: #{tpu_custom_call.1} parent=1 // pred_region
      %52 = vst [vmem:[#allocation2] sm:$0xff] 0.0
    $region21: #{tpu_custom_call.1} parent=1 // pred_fallthru
      _
    %v53 = vld [vmem:[#allocation3] sm:$0xff]
    %v54 = vld [vmem:[#allocation3 + $0x8] sm:$0xff]
    %v55 = vld [vmem:[#allocation3 + $0x10] sm:$0xff]
    %v56 = vld [vmem:[#allocation6] sm:$0x7]
    %v59 = vunpack.c.l.s4 1966171168
    %v60 = vunpack.c.0.s8 %v59
    %v61 = vlaneseq
    %v62 = vshrl.u32 %v61, 7
    %v63 = vsub.s32 %v60, %v62
    %v64 = vrot.slane %v56, %v63
    %v65 = vcombine.high %v64, %v64
    %v67 = vunpack.c.l.s4 1966171168
    %v68 = vunpack.c.0.s8 %v67
    %v69 = vlaneseq
    %v70 = vshrl.u32 %v69, 7
    %v71 = vsub.s32 %v68, %v70
    %v72 = vrot.slane %v64, %v71
    %v74 = vunpack.c.l.s4 1966171168
    %v75 = vunpack.c.0.s8 %v74
    %v76 = vlaneseq
    %v77 = vshrl.u32 %v76, 7
    %v78 = vsub.s32 %v75, %v77
    %v79 = vrot.slane %v65, %v78
    %v80 = vcombine.high %v72, %v72
    %v81 = vlaneseq
    %v82 = vshrl.u32 %v81, 7
    %v83 = vsub.s32 0, %v82
    %v84 = vrot.slane %v72, %v83
    %v85 = vlaneseq
    %v86 = vshrl.u32 %v85, 7
    %v87 = vsub.s32 0, %v86
    %v88 = vrot.slane %v79, %v87
    %v89 = vlaneseq
    %v90 = vshrl.u32 %v89, 7
    %v91 = vsub.s32 0, %v90
    %v92 = vrot.slane %v80, %v91
    %v96 = vsub.f32 %v53, %v84
    %v97 = vsub.f32 %v54, %v88
    %v98 = vsub.f32 %v55, %v92
    %v99 = vmul.f32 %v96, %v96
    %v100 = vmul.f32 %v97, %v97
    %v101 = vmul.f32 %v98, %v98
    %v102 = vadd.f32 %v99, %v100
    %v103 = vadd.f32 %v102, %v101
    %v104 = vld [vmem:[#allocation2] sm:$0xff]
    %v105 = vadd.f32 %v104, %v103
    %106 = vst [vmem:[#allocation2] sm:$0xff] %v105
    // Predicated region
    $region22: #{tpu_custom_call.1} parent=1 // pred_check
      %p107 = pneg %p48
    $region23: #{tpu_custom_call.1} parent=1 // pred_check_branch
      %109 = sbr.rel (%p107) target = $region25
    $region24: #{tpu_custom_call.1} parent=1 // pred_region
      %v110 = vld [vmem:[#allocation2] sm:$0xff]
      %111 = vadd.xlane.f32.xlu0 %v110
      %v112 = vpop.xlane.xlu0 %111
      %v113 = vrot.slane %v112, 4
      %v114 = vadd.f32 %v112, %v113
      %v115 = vrot.slane %v114, 2
      %v116 = vadd.f32 %v114, %v115
      %v117 = vrot.slane %v116, 1
      %v118 = vadd.f32 %v116, %v117
      %s119 = vtos %v118
      %v120 = vstv %s119
      %121 = vst [vmem:[#allocation8] sm:$0xff] %v120
    $region25: #{tpu_custom_call.1} parent=1 // pred_fallthru
      _
    // Predicated region
    $region26: #{tpu_custom_call.1} parent=1 // pred_check
      _
    $region27: #{tpu_custom_call.1} parent=1 // pred_check_branch
      %123 = sbr.rel (0) target = $region29
    $region28: #{tpu_custom_call.1} parent=1 // pred_region
      %s125 = ssub.s32 128, 128
      %126 = vsyncadd [#allocation5], %s125
      %s128 = sshll.u32 [#allocation8], 4
      %s129 = int_to_ptr.vmem [resolvable:$true] %s128
      %131 = dma.vmem_to_hbm [thread:$0]  %s129, 128, %s2, [#allocation5]
    $region29: #{tpu_custom_call.1} parent=1 // pred_fallthru
      _
    // Predicated region
    $region30: #{tpu_custom_call.1} parent=1 // pred_check
      _
    $region31: #{tpu_custom_call.1} parent=1 // pred_check_branch
      %133 = sbr.rel (0) target = $region33
    $region32: #{tpu_custom_call.1} parent=1 // pred_region
      %134 = dma.done [#allocation5], 128
    $region33: #{tpu_custom_call.1} parent=1 // pred_fallthru
      _
    %135 = vsyncpa [#allocation4], 1
    %136 = vsyncpa [#allocation7], 1
    %137 = vsyncpa [#allocation5], 1

</llo_original>
